<compile_context>
chip_gen: v7x
topology: tpu7x:2x2x1
jax: 0.10.0
libtpu: 0.0.40
codegen_flags: <defaults>
</compile_context>

<pallas_src>
import jax
import jax.numpy as jnp
from jax import lax
from jax.experimental import pallas as pl
from jax.experimental.pallas import tpu as pltpu


def _repconv_kernel(xs_ref, w_ref, b_ref, o_ref):
    # xs_ref : (1, TM, 9*C1) bf16   im2col rows for TM output pixels
    # w_ref  : (9*C1, C2p)   bf16   BN-folded + 1x1-folded weights (lane-padded)
    # b_ref  : (1, C2p)      f32    combined bias
    # o_ref  : (1, TM, C2p)         output tile
    acc = jnp.dot(xs_ref[0], w_ref[...],
                  preferred_element_type=jnp.float32)        # (TM, C2p) f32
    acc = acc + b_ref[...]
    # SiLU with one EUP op: x * sigmoid(x), sigmoid(x) = 0.5*(1 + tanh(x/2)).
    y = acc * (0.5 * jnp.tanh(0.5 * acc) + 0.5)
    o_ref[0] = y.astype(o_ref.dtype)


def _pick_tile_m(m_total, k, c2p, budget_bytes=6 << 20):
    """Largest multiple-of-8 divisor of m_total whose double-buffered VMEM
    footprint (bf16 input rows + output rows) fits the budget."""
    bytes_per_row = 2 * (k * 2) + 2 * (c2p * 4)       # 2x buffers each
    cap = max(8, budget_bytes // max(bytes_per_row, 1))
    best = None
    for cand in range(8, min(m_total, cap) + 1, 8):
        if m_total % cand == 0:
            best = cand
    # TODO(synk): if H*W has no multiple-of-8 divisor, fall back to the full
    # extent (valid BlockSpec, just a bigger tile) instead of cdiv+masking.
    return best if best is not None else m_total


def repconv_pallas(x_nchw, w3_hwio, b3, w1_io, b1, *, tile_m=None,
                   nhwc_out=False, out_dtype=jnp.float32):
    """RepConv.forward. x_nchw: (N, C1, H, W) f32 -> (N, C2, H, W)."""
    N, C1, H, W = x_nchw.shape
    C2 = w3_hwio.shape[-1]
    K = 9 * C1
    M = H * W

    # Lane-pad C2 so the kernel's output stores are unmasked 128-lane vst.
    C2p = -(-C2 // 128) * 128

    # --- Re-parameterize (RepVGG): fold the 1x1 branch into the 3x3 centre
    #     tap and merge biases -> a single conv + bias.  Exact (zero halo).
    w_fused = w3_hwio.at[1, 1].add(w1_io)                     # (3,3,C1,C2) f32
    w_packed = w_fused.reshape(K, C2).astype(jnp.bfloat16)    # K = (kh*3+kw)*C1+ci
    bias = (b3 + b1).reshape(1, C2).astype(jnp.float32)
    if C2p != C2:
        w_packed = jnp.pad(w_packed, ((0, 0), (0, C2p - C2)))
        bias = jnp.pad(bias, ((0, 0), (0, C2p - C2)))

    # --- Prologue (fused XLA pass): NCHW->NHWC, 1px zero halo, full 3x3
    #     im2col, flatten spatial so the kernel is a plain 2D matmul.
    x_nhwc = jnp.transpose(x_nchw, (0, 2, 3, 1))
    x_pad = jnp.pad(x_nhwc, ((0, 0), (1, 1), (1, 1), (0, 0)))
    cols = [x_pad[:, kh:kh + H, kw:kw + W, :]
            for kh in range(3) for kw in range(3)]
    xs = jnp.concatenate(cols, axis=-1).astype(jnp.bfloat16)   # (N, H, W, 9C1)
    xs = xs.reshape(N, M, K)

    if tile_m is None:
        tile_m = _pick_tile_m(M, K, C2p)
    tile_m = min(tile_m, M)
    assert M % tile_m == 0

    out_flat = pl.pallas_call(
        _repconv_kernel,
        out_shape=jax.ShapeDtypeStruct((N, M, C2p), out_dtype),
        grid_spec=pltpu.PrefetchScalarGridSpec(
            num_scalar_prefetch=0,
            grid=(N, M // tile_m),
            in_specs=[
                pl.BlockSpec((1, tile_m, K), lambda n, t: (n, t, 0)),
                pl.BlockSpec((K, C2p), lambda n, t: (0, 0)),
                pl.BlockSpec((1, C2p), lambda n, t: (0, 0)),
            ],
            out_specs=pl.BlockSpec((1, tile_m, C2p), lambda n, t: (n, t, 0)),
        ),
        compiler_params=pltpu.CompilerParams(
            dimension_semantics=("parallel", "parallel")),
    )(xs, w_packed, bias)

    out = out_flat[..., :C2] if C2p != C2 else out_flat
    out = out.reshape(N, H, W, C2)
    if nhwc_out:         # consumers that accept NHWC skip the final transpose
        return out
    return jnp.transpose(out, (0, 3, 1, 2))


def make_params(key, c1, c2):
    """Deterministic RepConv params (conv weights + eval-mode BN), BN-folded."""
    ks = jax.random.split(key, 10)
    w3_oihw = jax.random.normal(ks[0], (c2, c1, 3, 3), jnp.float32) * 0.1
    w1_oihw = jax.random.normal(ks[1], (c2, c1, 1, 1), jnp.float32) * 0.1
    eps = 1e-5  # nn.BatchNorm2d default
    g1 = 1.0 + 0.1 * jax.random.normal(ks[2], (c2,), jnp.float32)
    beta1 = 0.1 * jax.random.normal(ks[3], (c2,), jnp.float32)
    m1 = 0.1 * jax.random.normal(ks[4], (c2,), jnp.float32)
    v1 = jnp.abs(jax.random.normal(ks[5], (c2,), jnp.float32)) + 0.5
    g2 = 1.0 + 0.1 * jax.random.normal(ks[6], (c2,), jnp.float32)
    beta2 = 0.1 * jax.random.normal(ks[7], (c2,), jnp.float32)
    m2 = 0.1 * jax.random.normal(ks[8], (c2,), jnp.float32)
    v2 = jnp.abs(jax.random.normal(ks[9], (c2,), jnp.float32)) + 0.5

    std1, std2 = jnp.sqrt(v1 + eps), jnp.sqrt(v2 + eps)
    w3f_oihw = w3_oihw * (g1 / std1).reshape(c2, 1, 1, 1)
    w1f_oihw = w1_oihw * (g2 / std2).reshape(c2, 1, 1, 1)
    b3 = beta1 - m1 * g1 / std1
    b1 = beta2 - m2 * g2 / std2

    w3_hwio = jnp.transpose(w3f_oihw, (2, 3, 1, 0))           # (3, 3, c1, c2)
    w1_io = jnp.transpose(w1f_oihw[:, :, 0, 0], (1, 0))       # (c1, c2)
    return w3_hwio, b3, w1_io, b1, (w3f_oihw, w1f_oihw)


def reference(x_nchw, w3f_oihw, b3, w1f_oihw, b1):
    """Pure-JAX f32 reference matching RepConv.forward (bn=False, eval BN)."""
    y3 = lax.conv_general_dilated(x_nchw, w3f_oihw, (1, 1), ((1, 1), (1, 1)),
                                  dimension_numbers=("NCHW", "OIHW", "NCHW"))
    y1 = lax.conv_general_dilated(x_nchw, w1f_oihw, (1, 1), ((0, 0), (0, 0)),
                                  dimension_numbers=("NCHW", "OIHW", "NCHW"))
    y = y3 + b3.reshape(1, -1, 1, 1) + y1 + b1.reshape(1, -1, 1, 1)
    return y * jax.nn.sigmoid(y)


if __name__ == "__main__":
    key = jax.random.PRNGKey(0)
    kx, kp = jax.random.split(key)

    N, C1, H, W = 2, 4, 16, 16
    C2 = 8
    x = jax.random.normal(kx, (N, C1, H, W), jnp.float32)

    w3_hwio, b3, w1_io, b1, (w3f_oihw, w1f_oihw) = make_params(kp, C1, C2)

    out = jax.block_until_ready(repconv_pallas(x, w3_hwio, b3, w1_io, b1))

    ref = reference(x, w3f_oihw, b3, w1f_oihw, b1)
    assert out.shape == (N, C2, H, W)
    max_err = float(jnp.max(jnp.abs(out - ref)))
    # bf16 MXU operands -> modest tolerance (inference-grade accuracy).
    assert jnp.allclose(out, ref, atol=2e-2, rtol=2e-2), max_err

    # TODO(synk): grouped conv (g > 1), the optional identity-BN branch
    # (bn=True) and stride > 1 are not exercised by the default RepConv
    # config used in RT-DETR and are omitted.
    print("KERNEL_OK")
</pallas_src>

<mosaic_0001>
module attributes {stable_mosaic.version = 11 : i64} {
  func.func @_repconv_kernel(%arg0: i32, %arg1: i32, %arg2: memref<1x256x36xbf16, #tpu.memory_space<vmem>>, %arg3: memref<36x128xbf16, #tpu.memory_space<vmem>>, %arg4: memref<1x128xf32, #tpu.memory_space<vmem>>, %arg5: memref<1x256x128xf32, #tpu.memory_space<vmem>>) attributes {dimension_semantics = [#tpu.dimension_semantics<parallel>, #tpu.dimension_semantics<parallel>], iteration_bounds = array<i64: 2, 1>, scalar_prefetch = 0 : i64, scratch_operands = 0 : i64, tpu.core_type = #tpu.core_type<tc>, window_params = [{transform_indices = @transform_0, window_bounds = array<i64: 1, 256, 36>}, {pipeline_mode = #tpu.pipeline_mode<synchronous>, transform_indices = @transform_1, window_bounds = array<i64: 36, 128>}, {pipeline_mode = #tpu.pipeline_mode<synchronous>, transform_indices = @transform_2, window_bounds = array<i64: 1, 128>}, {transform_indices = @transform_3, window_bounds = array<i64: 1, 256, 128>}]} {
    %c0 = arith.constant 0 : index
    %c0_0 = arith.constant 0 : index
    %c0_1 = arith.constant 0 : index
    %0 = vector.load %arg2[%c0, %c0_0, %c0_1] : memref<1x256x36xbf16, #tpu.memory_space<vmem>>, vector<1x256x36xbf16>
    %1 = vector.shape_cast %0 : vector<1x256x36xbf16> to vector<256x36xbf16>
    %c0_2 = arith.constant 0 : index
    %c0_3 = arith.constant 0 : index
    %2 = vector.load %arg3[%c0_2, %c0_3] : memref<36x128xbf16, #tpu.memory_space<vmem>>, vector<36x128xbf16>
    %cst = arith.constant dense<0.000000e+00> : vector<256x128xf32>
    %3 = tpu.matmul %1, %2, %cst {dimension_numbers = #tpu.dot_dimension_numbers<[1], [0], [0], [1], [0, 0, 1, 1], [], []>} : vector<256x36xbf16>, vector<36x128xbf16>, vector<256x128xf32> -> vector<256x128xf32>
    %c0_4 = arith.constant 0 : index
    %c0_5 = arith.constant 0 : index
    %4 = vector.load %arg4[%c0_4, %c0_5] : memref<1x128xf32, #tpu.memory_space<vmem>>, vector<1x128xf32>
    %5 = vector.broadcast %4 : vector<1x128xf32> to vector<256x128xf32>
    %6 = arith.addf %3, %5 : vector<256x128xf32>
    %cst_6 = arith.constant 5.000000e-01 : f32
    %7 = vector.broadcast %cst_6 : f32 to vector<256x128xf32>
    %8 = arith.mulf %7, %6 : vector<256x128xf32>
    %9 = math.tanh %8 : vector<256x128xf32>
    %cst_7 = arith.constant 5.000000e-01 : f32
    %10 = vector.broadcast %cst_7 : f32 to vector<256x128xf32>
    %11 = arith.mulf %10, %9 : vector<256x128xf32>
    %cst_8 = arith.constant 5.000000e-01 : f32
    %12 = vector.broadcast %cst_8 : f32 to vector<256x128xf32>
    %13 = arith.addf %11, %12 : vector<256x128xf32>
    %14 = arith.mulf %6, %13 : vector<256x128xf32>
    %c0_9 = arith.constant 0 : index
    %c0_10 = arith.constant 0 : index
    %c0_11 = arith.constant 0 : index
    %15 = vector.load %arg5[%c0_9, %c0_10, %c0_11] : memref<1x256x128xf32, #tpu.memory_space<vmem>>, vector<1x256x128xf32>
    %16 = vector.shape_cast %15 : vector<1x256x128xf32> to vector<256x128xf32>
    %17 = vector.shape_cast %14 : vector<256x128xf32> to vector<1x256x128xf32>
    tpu.vector_store %arg5[%c0_9, %c0_10, %c0_11], %17 {strides = array<i32>} : memref<1x256x128xf32, #tpu.memory_space<vmem>>, vector<1x256x128xf32>,
    return
  }
  func.func @transform_0(%arg0: i32, %arg1: i32) -> (i32, i32, i32) {
    %c0_i32 = arith.constant 0 : i32
    %c0_i32_0 = arith.constant 0 : i32
    return %arg0, %arg1, %c0_i32 : i32, i32, i32
  }
  func.func @transform_1(%arg0: i32, %arg1: i32) -> (i32, i32) {
    %c0_i32 = arith.constant 0 : i32
    %c0_i32_0 = arith.constant 0 : i32
    %c0_i32_1 = arith.constant 0 : i32
    return %c0_i32, %c0_i32_0 : i32, i32
  }
  func.func @transform_2(%arg0: i32, %arg1: i32) -> (i32, i32) {
    %c0_i32 = arith.constant 0 : i32
    %c0_i32_0 = arith.constant 0 : i32
    %c0_i32_1 = arith.constant 0 : i32
    return %c0_i32, %c0_i32_0 : i32, i32
  }
  func.func @transform_3(%arg0: i32, %arg1: i32) -> (i32, i32, i32) {
    %c0_i32 = arith.constant 0 : i32
    %c0_i32_0 = arith.constant 0 : i32
    return %arg0, %arg1, %c0_i32 : i32, i32, i32
  }
}

</mosaic_0001>

<llo_original>
// kernel: tpu_custom_call.1
$region0: #{tpu_custom_call.1}
  #allocation0 [shape = 'u32[]', space=smem, size = 0x4, offset = 0x4, fixed_abs, tag = 'smem constant byte address 0x4 - core index']
  #allocation1 [shape = 'u32[144,128]{1,0:T(1,128)}', space=vmem, size = 0x12000, scoped, tag = 'internal scratch']
  %s0 = inlined_call_operand.vmem [shape: bf16[2,256,36], index: 0, kind: input, shape index: {}]
  %s1 = inlined_call_operand.vmem [shape: bf16[36,128], index: 1, kind: input, shape index: {}]
  %s2 = inlined_call_operand.vmem [shape: f32[1,128], index: 2, kind: input, shape index: {}]
  %s3 = inlined_call_operand.hbm [shape: f32[2,256,128], index: 3, kind: output, shape index: {}]
  %s4 = sld [smem:[#allocation0]]
  $region45: #{tpu_custom_call.1} parent=0
    _
  %s6 = ssub.s32 1, %s4
  %s7 = scalar_select 0, %s6, %s4
  $region1: #{tpu_custom_call.1} parent=0
    #allocation2 [shape = 'u8[262144]{0}', space=vmem, size = 0x40000, scoped, tag = 'output window, operand 0']
    #allocation3 [shape = 's32[2]{0}', space=sflag, size = 0x8, scoped, tag = 'scoped memory for tpu_custom_call.1']
    %8 = vsyncpa [#allocation3], 0
    %s9 = scalar_lea.sflag [#allocation3], 1
    %10 = vsyncpa %s9, 0
    loop: start=0, step=1, limit=4
    $region2: #{tpu_custom_call.1} parent=1 // loop_pre_header
      _
    $region3: #{tpu_custom_call.1} parent=1 // loop_header
      %s12 = sphi 0, %s16
      %p13 = scmp.ge.s32.totalorder %s12, 4
      %s19 = sphi 0, %s31
      %s20 = sphi 0, %s27
      %s21 = sphi 0, %s19
      %s22 = sphi 0, %s20
      %s23 = sphi 0, %s21
      %s24 = sphi 0, %s22
      %s36 = sphi 0, %s38
      %s39 = sphi 0, %s36
      %s40 = sphi 0, %s39
      %s56 = sphi 0, %s40
      %s60 = sphi 0, %s60
      %s62 = sphi 0, %s60
      %s63 = sphi 0, %s62
      %s77 = sphi 0, %s63
      %s81 = sphi 0, %s81
      %s83 = sphi 0, %s81
      %s84 = sphi 0, %s83
      %s98 = sphi 0, %s84
      %s106 = sphi 0, %s108
      %s109 = sphi 0, %s106
      %s110 = sphi 0, %s109
      %s126 = sphi 0, %s110
    $region4: #{tpu_custom_call.1} parent=1 // loop_header_branch
      %15 = sbr.rel (%p13) target = $region8
    $region5: #{tpu_custom_call.1} parent=1 // loop_body
      %s17 = ssub.s32 %s12, 1
      %s18 = ssub.s32 %s12, 2
      %s25 = sadd.s32 1, %s20
      %p26 = scmp.ge.s32.totalorder %s25, 1
      %s27 = scalar_select %p26, 0, %s25
      %s28 = sadd.s32 1, %s19
      %s29 = scalar_select %p26, %s28, %s19
      %p30 = scmp.ge.s32.totalorder %s29, 2
      %s31 = scalar_select %p30, 0, %s29
      %s32 = ssub.s32 %s19, %s31
      %s33 = ssub.s32 %s20, %s27
      %s34 = sor.u32 %s32, %s33
      %p35 = scmp.eq.s32.totalorder %s34, 0
      %s37 = sadd.s32 %s36, 1
      %s38 = scalar_select %p35, %s36, %s37
      %p41 = pneg %p35
      %p42 = scmp.eq.s32.totalorder %s12, 1
      %p43 = por %p41, %p42
      %p44 = scmp.ne.s32.totalorder %s36, %s39
      %p45 = scmp.eq.s32.totalorder %s12, 0
      %p46 = por %p44, %p45
      %p47 = scmp.ne.s32.totalorder %s36, %s39
      %p48 = scmp.eq.s32.totalorder %s17, 1
      %p49 = por %p47, %p48
      %p50 = scmp.ne.s32.totalorder %s39, %s40
      %p51 = scmp.eq.s32.totalorder %s17, 0
      %p52 = por %p50, %p51
      %p53 = scmp.ne.s32.totalorder %s39, %s40
      %p54 = scmp.eq.s32.totalorder %s18, 1
      %p55 = por %p53, %p54
      %p57 = scmp.ne.s32.totalorder %s40, %s56
      %p58 = scmp.eq.s32.totalorder %s18, 0
      %p59 = por %p57, %p58
      %s61 = sadd.s32 %s60, 1
      %p64 = scmp.eq.s32.totalorder %s12, 1
      %p65 = scmp.ne.s32.totalorder %s60, %s62
      %p66 = scmp.eq.s32.totalorder %s12, 0
      %p67 = por %p65, %p66
      %p68 = scmp.ne.s32.totalorder %s60, %s62
      %p69 = scmp.eq.s32.totalorder %s17, 1
      %p70 = por %p68, %p69
      %p71 = scmp.ne.s32.totalorder %s62, %s63
      %p72 = scmp.eq.s32.totalorder %s17, 0
      %p73 = por %p71, %p72
      %p74 = scmp.ne.s32.totalorder %s62, %s63
      %p75 = scmp.eq.s32.totalorder %s18, 1
      %p76 = por %p74, %p75
      %p78 = scmp.ne.s32.totalorder %s63, %s77
      %p79 = scmp.eq.s32.totalorder %s18, 0
      %p80 = por %p78, %p79
      %s82 = sadd.s32 %s81, 1
      %p85 = scmp.eq.s32.totalorder %s12, 1
      %p86 = scmp.ne.s32.totalorder %s81, %s83
      %p87 = scmp.eq.s32.totalorder %s12, 0
      %p88 = por %p86, %p87
      %p89 = scmp.ne.s32.totalorder %s81, %s83
      %p90 = scmp.eq.s32.totalorder %s17, 1
      %p91 = por %p89, %p90
      %p92 = scmp.ne.s32.totalorder %s83, %s84
      %p93 = scmp.eq.s32.totalorder %s17, 0
      %p94 = por %p92, %p93
      %p95 = scmp.ne.s32.totalorder %s83, %s84
      %p96 = scmp.eq.s32.totalorder %s18, 1
      %p97 = por %p95, %p96
      %p99 = scmp.ne.s32.totalorder %s84, %s98
      %p100 = scmp.eq.s32.totalorder %s18, 0
      %p101 = por %p99, %p100
      %s102 = ssub.s32 %s19, %s31
      %s103 = ssub.s32 %s20, %s27
      %s104 = sor.u32 %s102, %s103
      %p105 = scmp.eq.s32.totalorder %s104, 0
      %s107 = sadd.s32 %s106, 1
      %s108 = scalar_select %p105, %s106, %s107
      %p111 = pneg %p105
      %p112 = scmp.eq.s32.totalorder %s12, 1
      %p113 = por %p111, %p112
      %p114 = scmp.ne.s32.totalorder %s106, %s109
      %p115 = scmp.eq.s32.totalorder %s12, 0
      %p116 = por %p114, %p115
      %p117 = scmp.ne.s32.totalorder %s106, %s109
      %p118 = scmp.eq.s32.totalorder %s17, 1
      %p119 = por %p117, %p118
      %p120 = scmp.ne.s32.totalorder %s109, %s110
      %p121 = scmp.eq.s32.totalorder %s17, 0
      %p122 = por %p120, %p121
      %p123 = scmp.ne.s32.totalorder %s109, %s110
      %p124 = scmp.eq.s32.totalorder %s18, 1
      %p125 = por %p123, %p124
      %p127 = scmp.ne.s32.totalorder %s110, %s126
      %p128 = scmp.eq.s32.totalorder %s18, 0
      %p129 = por %p127, %p128
      %p130 = scmp.le.s32.totalorder 1, %s12
      %p131 = scmp.lt.s32.totalorder %s12, 3
      %p132 = pnand %p130, %p131
      %p133 = pneg %p132
      // Predicated region
      $region9: #{tpu_custom_call.1} parent=5 // pred_check
        _
      $region10: #{tpu_custom_call.1} parent=5 // pred_check_branch
        %135 = sbr.rel (%p132) target = $region12
      $region11: #{tpu_custom_call.1} parent=5 // pred_region
        %s136 = ssub.s32 %s12, 1
        // Predicated region
        $region13: #{tpu_custom_call.1} parent=11 // pred_check
          %p137 = pneg %p73
        $region14: #{tpu_custom_call.1} parent=11 // pred_check_branch
          %139 = sbr.rel (%p137) target = $region16
        $region15: #{tpu_custom_call.1} parent=11 // pred_region
          _
        $region16: #{tpu_custom_call.1} parent=11 // pred_fallthru
          _
        // Predicated region
        $region17: #{tpu_custom_call.1} parent=11 // pred_check
          %p140 = pneg %p94
        $region18: #{tpu_custom_call.1} parent=11 // pred_check_branch
          %142 = sbr.rel (%p140) target = $region20
        $region19: #{tpu_custom_call.1} parent=11 // pred_region
          _
        $region20: #{tpu_custom_call.1} parent=11 // pred_fallthru
          _
      $region12: #{tpu_custom_call.1} parent=5 // pred_fallthru
        _
      %p143 = scmp.lt.s32.totalorder %s12, 2
      // Predicated region
      $region21: #{tpu_custom_call.1} parent=5 // pred_check
        %p144 = pneg %p143
      $region22: #{tpu_custom_call.1} parent=5 // pred_check_branch
        %146 = sbr.rel (%p144) target = $region24
      $region23: #{tpu_custom_call.1} parent=5 // pred_region
        // Predicated region
        $region25: #{tpu_custom_call.1} parent=23 // pred_check
          %p147 = pneg %p46
        $region26: #{tpu_custom_call.1} parent=23 // pred_check_branch
          %149 = sbr.rel (%p147) target = $region28
        $region27: #{tpu_custom_call.1} parent=23 // pred_region
          %s150 = smul.u32 32, %s20
          %p151 = scmp.lt.s32.totalorder %s19, 1
          %s152 = scalar_select %p151, %s19, 1
          %p153 = scmp.lt.s32.totalorder %s150, 31
          %s154 = scalar_select %p153, %s150, 31
          %s155 = smul.addr %s152, 32
          %s156 = sadd.s32 %s154, %s155
          %s157 = smul.addr %s156, 4
          %s158 = scalar_lea.vmem %s0, %s157
          %s159 = smul.u32 32, %s20
        $region28: #{tpu_custom_call.1} parent=23 // pred_fallthru
          _
      $region24: #{tpu_custom_call.1} parent=5 // pred_fallthru
        _
      %p160 = scmp.le.s32.totalorder 1, %s12
      %p161 = scmp.lt.s32.totalorder %s12, 3
      %p162 = pnand %p160, %p161
      %p163 = pneg %p162
      // Predicated region
      $region29: #{tpu_custom_call.1} parent=5 // pred_check
        _
      $region30: #{tpu_custom_call.1} parent=5 // pred_check_branch
        %165 = sbr.rel (%p162) target = $region32
      $region31: #{tpu_custom_call.1} parent=5 // pred_region
        %s166 = ssub.s32 %s12, 1
        %s167 = smul.u32 32, %s22
        %p168 = scmp.lt.s32.totalorder %s21, 1
        %s169 = scalar_select %p168, %s21, 1
        %p170 = scmp.lt.s32.totalorder %s167, 31
        %s171 = scalar_select %p170, %s167, 31
        %s172 = smul.addr %s169, 32
        %s173 = sadd.s32 %s171, %s172
        %s174 = smul.addr %s173, 4
        %s175 = scalar_lea.vmem %s0, %s174
        %p176 = pneg %p52
        %p177 = pneg %p49
        %p178 = pneg %p73
        %p179 = pneg %p70
        %p180 = pneg %p94
        %p181 = pneg %p91
        %p182 = pneg %p122
        %p183 = pneg %p119
        %s184 = sand.u32 %s109, 1
        %s185 = scalar_lea.sflag [#allocation3], %s184
        %s186 = sand.u32 %s109, 1
        %s187 = smul.addr %s186, 256
        %s188 = scalar_lea.vmem [#allocation2], %s187
        %s189 = smul.u32 32, %s22
        %p190 = scmp.lt.s32.totalorder %s21, 1
        %s191 = scalar_select %p190, %s21, 1
        %p192 = scmp.lt.s32.totalorder %s189, 31
        %s193 = scalar_select %p192, %s189, 31
        %s194 = smul.addr %s191, 32
        %s195 = sadd.s32 %s193, %s194
        %s196 = smul.addr %s195, 4
        %s197 = scalar_lea.vmem %s0, %s196
        %s198 = smul.u32 32, %s22
        %s199 = smul.u32 32, %s22
        %v201 = vld [vmem:[%s197] sm:$0xf]
        %v202 = vld [vmem:[%s197 + $0x4] sm:$0xf]
        %v203 = vld [vmem:[%s197 + $0x8] sm:$0xf]
        %v204 = vld [vmem:[%s197 + $0xc] sm:$0xf]
        %v205 = vld [vmem:[%s197 + $0x10] sm:$0xf]
        %v206 = vld [vmem:[%s197 + $0x14] sm:$0xf]
        %v207 = vld [vmem:[%s197 + $0x18] sm:$0xf]
        %v208 = vld [vmem:[%s197 + $0x1c] sm:$0xf]
        %v209 = vld [vmem:[%s197 + $0x20] sm:$0xf]
        %v210 = vld [vmem:[%s197 + $0x24] sm:$0xf]
        %v211 = vld [vmem:[%s197 + $0x28] sm:$0xf]
        %v212 = vld [vmem:[%s197 + $0x2c] sm:$0xf]
        %v213 = vld [vmem:[%s197 + $0x30] sm:$0xf]
        %v214 = vld [vmem:[%s197 + $0x34] sm:$0xf]
        %v215 = vld [vmem:[%s197 + $0x38] sm:$0xf]
        %v216 = vld [vmem:[%s197 + $0x3c] sm:$0xf]
        %v217 = vld [vmem:[%s197 + $0x40] sm:$0xf]
        %v218 = vld [vmem:[%s197 + $0x44] sm:$0xf]
        %v219 = vld [vmem:[%s197 + $0x48] sm:$0xf]
        %v220 = vld [vmem:[%s197 + $0x4c] sm:$0xf]
        %v221 = vld [vmem:[%s197 + $0x50] sm:$0xf]
        %v222 = vld [vmem:[%s197 + $0x54] sm:$0xf]
        %v223 = vld [vmem:[%s197 + $0x58] sm:$0xf]
        %v224 = vld [vmem:[%s197 + $0x5c] sm:$0xf]
        %v225 = vld [vmem:[%s197 + $0x60] sm:$0xf]
        %v226 = vld [vmem:[%s197 + $0x64] sm:$0xf]
        %v227 = vld [vmem:[%s197 + $0x68] sm:$0xf]
        %v228 = vld [vmem:[%s197 + $0x6c] sm:$0xf]
        %v229 = vld [vmem:[%s197 + $0x70] sm:$0xf]
        %v230 = vld [vmem:[%s197 + $0x74] sm:$0xf]
        %v231 = vld [vmem:[%s197 + $0x78] sm:$0xf]
        %v232 = vld [vmem:[%s197 + $0x7c] sm:$0xf]
        %v233 = vld [vmem:[%s1] sm:$0xf]
        %v234 = vld [vmem:[%s1 + $0x4] sm:$0xf]
        %v235 = vld [vmem:[%s1 + $0x8] sm:$0xf]
        %v236 = vld [vmem:[%s1 + $0xc] sm:$0xf]
        %v237 = vld [vmem:[%s1 + $0x10] sm:$0x3]
        %v238 = vld [vmem:[%s2] sm:$0x1]
        %v240 = vlaneseq
        %v241 = vshrl.u32 %v240, 7
        %v242 = vsub.s32 0, %v241
        %v243 = vrot.slane %v238, %v242
        %v277 = vunpack.c.l.b16 %v201
        %v278 = vunpack.c.l.b16 %v202
        %v279 = vunpack.c.l.b16 %v203
        %v280 = vunpack.c.l.b16 %v204
        %v281 = vunpack.c.l.b16 %v205
        %v282 = vunpack.c.l.b16 %v206
        %v283 = vunpack.c.l.b16 %v207
        %v284 = vunpack.c.l.b16 %v208
        %v285 = vunpack.c.l.b16 %v209
        %v286 = vunpack.c.l.b16 %v210
        %v287 = vunpack.c.l.b16 %v211
        %v288 = vunpack.c.l.b16 %v212
        %v289 = vunpack.c.l.b16 %v213
        %v290 = vunpack.c.l.b16 %v214
        %v291 = vunpack.c.l.b16 %v215
        %v292 = vunpack.c.l.b16 %v216
        %v293 = vunpack.c.l.b16 %v217
        %v294 = vunpack.c.l.b16 %v218
        %v295 = vunpack.c.l.b16 %v219
        %v296 = vunpack.c.l.b16 %v220
        %v297 = vunpack.c.l.b16 %v221
        %v298 = vunpack.c.l.b16 %v222
        %v299 = vunpack.c.l.b16 %v223
        %v300 = vunpack.c.l.b16 %v224
        %v301 = vunpack.c.l.b16 %v225
        %v302 = vunpack.c.l.b16 %v226
        %v303 = vunpack.c.l.b16 %v227
        %v304 = vunpack.c.l.b16 %v228
        %v305 = vunpack.c.l.b16 %v229
        %v306 = vunpack.c.l.b16 %v230
        %v307 = vunpack.c.l.b16 %v231
        %v308 = vunpack.c.l.b16 %v232
        %v309 = vpack.c.b16 %v278, %v277
        %v310 = vpack.c.b16 %v280, %v279
        %v311 = vpack.c.b16 %v282, %v281
        %v312 = vpack.c.b16 %v284, %v283
        %v313 = vpack.c.b16 %v286, %v285
        %v314 = vpack.c.b16 %v288, %v287
        %v315 = vpack.c.b16 %v290, %v289
        %v316 = vpack.c.b16 %v292, %v291
        %v317 = vpack.c.b16 %v294, %v293
        %v318 = vpack.c.b16 %v296, %v295
        %v319 = vpack.c.b16 %v298, %v297
        %v320 = vpack.c.b16 %v300, %v299
        %v321 = vpack.c.b16 %v302, %v301
        %v322 = vpack.c.b16 %v304, %v303
        %v323 = vpack.c.b16 %v306, %v305
        %v324 = vpack.c.b16 %v308, %v307
        %v330 = vunpack.c.l.b16 %v233
        %v331 = vunpack.c.l.b16 %v234
        %v332 = vunpack.c.l.b16 %v235
        %v333 = vunpack.c.l.b16 %v236
        %v334 = vunpack.c.l.b16 %v237
        %v335 = vpack.c.b16 %v331, %v330
        %v336 = vpack.c.b16 %v333, %v332
        %v337 = vpack.c.b16 %v334, %v334
        %vm340 = vcmask 293888
        %v342 = vsel %vm340, %v309, 0
        %v345 = vsel %vm340, %v310, 0
        %v348 = vsel %vm340, %v311, 0
        %v351 = vsel %vm340, %v312, 0
        %v354 = vsel %vm340, %v313, 0
        %v357 = vsel %vm340, %v314, 0
        %v360 = vsel %vm340, %v315, 0
        %v363 = vsel %vm340, %v316, 0
        %v366 = vsel %vm340, %v317, 0
        %v369 = vsel %vm340, %v318, 0
        %v372 = vsel %vm340, %v319, 0
        %v375 = vsel %vm340, %v320, 0
        %v378 = vsel %vm340, %v321, 0
        %v381 = vsel %vm340, %v322, 0
        %v384 = vsel %vm340, %v323, 0
        %v387 = vsel %vm340, %v324, 0
        %vm389 = vcmask 1041408
        %v391 = vsel %vm389, %v337, 0
        %393 = vmatprep.subr.bf16.mxu0 0
        %394 = vmatpush1.bf16.msra.mxu0 %v335
        %395 = vmatprep.subr.bf16.mxu0 0
        %396 = vmatpush1.bf16.msra.mxu0 %v336
        %397 = vmatprep.subr.bf16.mxu0 0
        %398 = vmatpush1.bf16.msra.mxu0 %v391
        %399 = vmatprep.subr.bf16.mxu0 0
        %400 = vmatpush1.bf16.msra.mxu0 0
        %401 = vmatprep.subr.bf16.mxu0 0
        %402 = vmatpush1.bf16.msra.mxu0 0
        %403 = vmatprep.subr.bf16.mxu0 0
        %404 = vmatpush1.bf16.msra.mxu0 0
        %405 = vmatprep.subr.bf16.mxu0 0
        %406 = vmatpush1.bf16.msra.mxu0 0
        %407 = vmatprep.subr.bf16.mxu0 0
        %408 = vmatpush1.bf16.msra.mxu0 0
        %409 = vmatprep.subr.bf16.mxu0 0
        %410 = vmatpush1.bf16.msra.mxu0 0
        %411 = vmatprep.subr.bf16.mxu0 0
        %412 = vmatpush1.bf16.msra.mxu0 0
        %413 = vmatprep.subr.bf16.mxu0 0
        %414 = vmatpush1.bf16.msra.mxu0 0
        %415 = vmatprep.subr.bf16.mxu0 0
        %416 = vmatpush1.bf16.msra.mxu0 0
        %417 = vmatprep.subr.bf16.mxu0 0
        %418 = vmatpush1.bf16.msra.mxu0 0
        %419 = vmatprep.subr.bf16.mxu0 0
        %420 = vmatpush1.bf16.msra.mxu0 0
        %421 = vmatprep.subr.bf16.mxu0 0
        %422 = vmatpush1.bf16.msra.mxu0 0
        %423 = vmatprep.subr.bf16.mxu0 0
        %424 = vmatpush1.bf16.msra.mxu0 0
        %425 = vmatprep.mubr.bf16.mxu0 0
        %426 = vmatmul.mubr.bf16.gmra.mrb[0].mxu0 %v342
        %v427 = vpop.f32.mrb[0].mxu0
        %v428 = vadd.f32 %v243, %v427
        %v429 = vpop.f32.mrb[0].mxu0
        %v430 = vpop.f32.mrb[0].mxu0
        %v431 = vadd.f32 %v243, %v430
        %v432 = vpop.f32.mrb[0].mxu0
        %433 = vmatprep.mubr.bf16.mxu0 0
        %434 = vmatmul.mubr.bf16.gmra.mrb[0].mxu0 %v345
        %v435 = vpop.f32.mrb[0].mxu0
        %v436 = vadd.f32 %v243, %v435
        %v437 = vpop.f32.mrb[0].mxu0
        %v438 = vpop.f32.mrb[0].mxu0
        %v439 = vadd.f32 %v243, %v438
        %v440 = vpop.f32.mrb[0].mxu0
        %441 = vmatprep.mubr.bf16.mxu0 0
        %442 = vmatmul.mubr.bf16.gmra.mrb[0].mxu0 %v348
        %v443 = vpop.f32.mrb[0].mxu0
        %v444 = vadd.f32 %v243, %v443
        %v445 = vpop.f32.mrb[0].mxu0
        %v446 = vpop.f32.mrb[0].mxu0
        %v447 = vadd.f32 %v243, %v446
        %v448 = vpop.f32.mrb[0].mxu0
        %449 = vmatprep.mubr.bf16.mxu0 0
        %450 = vmatmul.mubr.bf16.gmra.mrb[0].mxu0 %v351
        %v451 = vpop.f32.mrb[0].mxu0
        %v452 = vadd.f32 %v243, %v451
        %v453 = vpop.f32.mrb[0].mxu0
        %v454 = vpop.f32.mrb[0].mxu0
        %v455 = vadd.f32 %v243, %v454
        %v456 = vpop.f32.mrb[0].mxu0
        %457 = vmatprep.mubr.bf16.mxu0 0
        %458 = vmatmul.mubr.bf16.gmra.mrb[0].mxu0 %v354
        %v459 = vpop.f32.mrb[0].mxu0
        %v460 = vadd.f32 %v243, %v459
        %v461 = vpop.f32.mrb[0].mxu0
        %v462 = vpop.f32.mrb[0].mxu0
        %v463 = vadd.f32 %v243, %v462
        %v464 = vpop.f32.mrb[0].mxu0
        %465 = vmatprep.mubr.bf16.mxu0 0
        %466 = vmatmul.mubr.bf16.gmra.mrb[0].mxu0 %v357
        %v467 = vpop.f32.mrb[0].mxu0
        %v468 = vadd.f32 %v243, %v467
        %v469 = vpop.f32.mrb[0].mxu0
        %v470 = vpop.f32.mrb[0].mxu0
        %v471 = vadd.f32 %v243, %v470
        %v472 = vpop.f32.mrb[0].mxu0
        %473 = vmatprep.mubr.bf16.mxu0 0
        %474 = vmatmul.mubr.bf16.gmra.mrb[0].mxu0 %v360
        %v475 = vpop.f32.mrb[0].mxu0
        %v476 = vadd.f32 %v243, %v475
        %v477 = vpop.f32.mrb[0].mxu0
        %v478 = vpop.f32.mrb[0].mxu0
        %v479 = vadd.f32 %v243, %v478
        %v480 = vpop.f32.mrb[0].mxu0
        %481 = vmatprep.mubr.bf16.mxu0 0
        %482 = vmatmul.mubr.bf16.gmra.mrb[0].mxu0 %v363
        %v483 = vpop.f32.mrb[0].mxu0
        %v484 = vadd.f32 %v243, %v483
        %v485 = vpop.f32.mrb[0].mxu0
        %v486 = vpop.f32.mrb[0].mxu0
        %v487 = vadd.f32 %v243, %v486
        %v488 = vpop.f32.mrb[0].mxu0
        %489 = vmatprep.mubr.bf16.mxu0 0
        %490 = vmatmul.mubr.bf16.gmra.mrb[0].mxu0 %v366
        %v491 = vpop.f32.mrb[0].mxu0
        %v492 = vadd.f32 %v243, %v491
        %v493 = vpop.f32.mrb[0].mxu0
        %v494 = vpop.f32.mrb[0].mxu0
        %v495 = vadd.f32 %v243, %v494
        %v496 = vpop.f32.mrb[0].mxu0
        %497 = vmatprep.mubr.bf16.mxu0 0
        %498 = vmatmul.mubr.bf16.gmra.mrb[0].mxu0 %v369
        %v499 = vpop.f32.mrb[0].mxu0
        %v500 = vadd.f32 %v243, %v499
        %v501 = vpop.f32.mrb[0].mxu0
        %v502 = vpop.f32.mrb[0].mxu0
        %v503 = vadd.f32 %v243, %v502
        %v504 = vpop.f32.mrb[0].mxu0
        %505 = vmatprep.mubr.bf16.mxu0 0
        %506 = vmatmul.mubr.bf16.gmra.mrb[0].mxu0 %v372
        %v507 = vpop.f32.mrb[0].mxu0
        %v508 = vadd.f32 %v243, %v507
        %v509 = vpop.f32.mrb[0].mxu0
        %v510 = vpop.f32.mrb[0].mxu0
        %v511 = vadd.f32 %v243, %v510
        %v512 = vpop.f32.mrb[0].mxu0
        %513 = vmatprep.mubr.bf16.mxu0 0
        %514 = vmatmul.mubr.bf16.gmra.mrb[0].mxu0 %v375
        %v515 = vpop.f32.mrb[0].mxu0
        %v516 = vadd.f32 %v243, %v515
        %v517 = vpop.f32.mrb[0].mxu0
        %v518 = vpop.f32.mrb[0].mxu0
        %v519 = vadd.f32 %v243, %v518
        %v520 = vpop.f32.mrb[0].mxu0
        %521 = vmatprep.mubr.bf16.mxu0 0
        %522 = vmatmul.mubr.bf16.gmra.mrb[0].mxu0 %v378
        %v523 = vpop.f32.mrb[0].mxu0
        %v524 = vadd.f32 %v243, %v523
        %v525 = vpop.f32.mrb[0].mxu0
        %v526 = vpop.f32.mrb[0].mxu0
        %v527 = vadd.f32 %v243, %v526
        %v528 = vpop.f32.mrb[0].mxu0
        %529 = vmatprep.mubr.bf16.mxu0 0
        %530 = vmatmul.mubr.bf16.gmra.mrb[0].mxu0 %v381
        %v531 = vpop.f32.mrb[0].mxu0
        %v532 = vadd.f32 %v243, %v531
        %v533 = vpop.f32.mrb[0].mxu0
        %v534 = vpop.f32.mrb[0].mxu0
        %v535 = vadd.f32 %v243, %v534
        %v536 = vpop.f32.mrb[0].mxu0
        %537 = vmatprep.mubr.bf16.mxu0 0
        %538 = vmatmul.mubr.bf16.gmra.mrb[0].mxu0 %v384
        %v539 = vpop.f32.mrb[0].mxu0
        %v540 = vadd.f32 %v243, %v539
        %v541 = vpop.f32.mrb[0].mxu0
        %v542 = vpop.f32.mrb[0].mxu0
        %v543 = vadd.f32 %v243, %v542
        %v544 = vpop.f32.mrb[0].mxu0
        %545 = vmatprep.mubr.bf16.mxu0 0
        %546 = vmatmul.mubr.bf16.gmra.mrb[0].mxu0 %v387
        %v547 = vpop.f32.mrb[0].mxu0
        %v548 = vadd.f32 %v243, %v547
        %v549 = vpop.f32.mrb[0].mxu0
        %v550 = vpop.f32.mrb[0].mxu0
        %v551 = vadd.f32 %v243, %v550
        %v552 = vpop.f32.mrb[0].mxu0
        %553 = vdwg.mxu0
        %v554 = vmul.f32 %v428, 0.5
        %v555 = vmul.f32 %v431, 0.5
        %v556 = vmul.f32 %v436, 0.5
        %v557 = vmul.f32 %v439, 0.5
        %v558 = vmul.f32 %v444, 0.5
        %v559 = vmul.f32 %v447, 0.5
        %v560 = vmul.f32 %v452, 0.5
        %v561 = vmul.f32 %v455, 0.5
        %v562 = vmul.f32 %v460, 0.5
        %v563 = vmul.f32 %v463, 0.5
        %v564 = vmul.f32 %v468, 0.5
        %v565 = vmul.f32 %v471, 0.5
        %v566 = vmul.f32 %v476, 0.5
        %v567 = vmul.f32 %v479, 0.5
        %v568 = vmul.f32 %v484, 0.5
        %v569 = vmul.f32 %v487, 0.5
        %v570 = vmul.f32 %v492, 0.5
        %v571 = vmul.f32 %v495, 0.5
        %v572 = vmul.f32 %v500, 0.5
        %v573 = vmul.f32 %v503, 0.5
        %v574 = vmul.f32 %v508, 0.5
        %v575 = vmul.f32 %v511, 0.5
        %v576 = vmul.f32 %v516, 0.5
        %v577 = vmul.f32 %v519, 0.5
        %v578 = vmul.f32 %v524, 0.5
        %v579 = vmul.f32 %v527, 0.5
        %v580 = vmul.f32 %v532, 0.5
        %v581 = vmul.f32 %v535, 0.5
        %v582 = vmul.f32 %v540, 0.5
        %v583 = vmul.f32 %v543, 0.5
        %v584 = vmul.f32 %v548, 0.5
        %v585 = vmul.f32 %v551, 0.5
        %v586 = vtanh.pop %v554
        %v587 = vtanh.pop %v555
        %v588 = vtanh.pop %v556
        %v589 = vtanh.pop %v557
        %v590 = vtanh.pop %v558
        %v591 = vtanh.pop %v559
        %v592 = vtanh.pop %v560
        %v593 = vtanh.pop %v561
        %v594 = vtanh.pop %v562
        %v595 = vtanh.pop %v563
        %v596 = vtanh.pop %v564
        %v597 = vtanh.pop %v565
        %v598 = vtanh.pop %v566
        %v599 = vtanh.pop %v567
        %v600 = vtanh.pop %v568
        %v601 = vtanh.pop %v569
        %v602 = vtanh.pop %v570
        %v603 = vtanh.pop %v571
        %v604 = vtanh.pop %v572
        %v605 = vtanh.pop %v573
        %v606 = vtanh.pop %v574
        %v607 = vtanh.pop %v575
        %v608 = vtanh.pop %v576
        %v609 = vtanh.pop %v577
        %v610 = vtanh.pop %v578
        %v611 = vtanh.pop %v579
        %v612 = vtanh.pop %v580
        %v613 = vtanh.pop %v581
        %v614 = vtanh.pop %v582
        %v615 = vtanh.pop %v583
        %v616 = vtanh.pop %v584
        %v617 = vtanh.pop %v585
        %v618 = vmul.f32 %v586, 0.5
        %v619 = vmul.f32 %v587, 0.5
        %v620 = vmul.f32 %v588, 0.5
        %v621 = vmul.f32 %v589, 0.5
        %v622 = vmul.f32 %v590, 0.5
        %v623 = vmul.f32 %v591, 0.5
        %v624 = vmul.f32 %v592, 0.5
        %v625 = vmul.f32 %v593, 0.5
        %v626 = vmul.f32 %v594, 0.5
        %v627 = vmul.f32 %v595, 0.5
        %v628 = vmul.f32 %v596, 0.5
        %v629 = vmul.f32 %v597, 0.5
        %v630 = vmul.f32 %v598, 0.5
        %v631 = vmul.f32 %v599, 0.5
        %v632 = vmul.f32 %v600, 0.5
        %v633 = vmul.f32 %v601, 0.5
        %v634 = vmul.f32 %v602, 0.5
        %v635 = vmul.f32 %v603, 0.5
        %v636 = vmul.f32 %v604, 0.5
        %v637 = vmul.f32 %v605, 0.5
        %v638 = vmul.f32 %v606, 0.5
        %v639 = vmul.f32 %v607, 0.5
        %v640 = vmul.f32 %v608, 0.5
        %v641 = vmul.f32 %v609, 0.5
        %v642 = vmul.f32 %v610, 0.5
        %v643 = vmul.f32 %v611, 0.5
        %v644 = vmul.f32 %v612, 0.5
        %v645 = vmul.f32 %v613, 0.5
        %v646 = vmul.f32 %v614, 0.5
        %v647 = vmul.f32 %v615, 0.5
        %v648 = vmul.f32 %v616, 0.5
        %v649 = vmul.f32 %v617, 0.5
        %v650 = vadd.f32 %v618, 0.5
        %v651 = vadd.f32 %v619, 0.5
        %v652 = vadd.f32 %v620, 0.5
        %v653 = vadd.f32 %v621, 0.5
        %v654 = vadd.f32 %v622, 0.5
        %v655 = vadd.f32 %v623, 0.5
        %v656 = vadd.f32 %v624, 0.5
        %v657 = vadd.f32 %v625, 0.5
        %v658 = vadd.f32 %v626, 0.5
        %v659 = vadd.f32 %v627, 0.5
        %v660 = vadd.f32 %v628, 0.5
        %v661 = vadd.f32 %v629, 0.5
        %v662 = vadd.f32 %v630, 0.5
        %v663 = vadd.f32 %v631, 0.5
        %v664 = vadd.f32 %v632, 0.5
        %v665 = vadd.f32 %v633, 0.5
        %v666 = vadd.f32 %v634, 0.5
        %v667 = vadd.f32 %v635, 0.5
        %v668 = vadd.f32 %v636, 0.5
        %v669 = vadd.f32 %v637, 0.5
        %v670 = vadd.f32 %v638, 0.5
        %v671 = vadd.f32 %v639, 0.5
        %v672 = vadd.f32 %v640, 0.5
        %v673 = vadd.f32 %v641, 0.5
        %v674 = vadd.f32 %v642, 0.5
        %v675 = vadd.f32 %v643, 0.5
        %v676 = vadd.f32 %v644, 0.5
        %v677 = vadd.f32 %v645, 0.5
        %v678 = vadd.f32 %v646, 0.5
        %v679 = vadd.f32 %v647, 0.5
        %v680 = vadd.f32 %v648, 0.5
        %v681 = vadd.f32 %v649, 0.5
        %v682 = vmul.f32 %v428, %v650
        %v683 = vmul.f32 %v431, %v651
        %v684 = vmul.f32 %v436, %v652
        %v685 = vmul.f32 %v439, %v653
        %v686 = vmul.f32 %v444, %v654
        %v687 = vmul.f32 %v447, %v655
        %v688 = vmul.f32 %v452, %v656
        %v689 = vmul.f32 %v455, %v657
        %v690 = vmul.f32 %v460, %v658
        %v691 = vmul.f32 %v463, %v659
        %v692 = vmul.f32 %v468, %v660
        %v693 = vmul.f32 %v471, %v661
        %v694 = vmul.f32 %v476, %v662
        %v695 = vmul.f32 %v479, %v663
        %v696 = vmul.f32 %v484, %v664
        %v697 = vmul.f32 %v487, %v665
        %v698 = vmul.f32 %v492, %v666
        %v699 = vmul.f32 %v495, %v667
        %v700 = vmul.f32 %v500, %v668
        %v701 = vmul.f32 %v503, %v669
        %v702 = vmul.f32 %v508, %v670
        %v703 = vmul.f32 %v511, %v671
        %v704 = vmul.f32 %v516, %v672
        %v705 = vmul.f32 %v519, %v673
        %v706 = vmul.f32 %v524, %v674
        %v707 = vmul.f32 %v527, %v675
        %v708 = vmul.f32 %v532, %v676
        %v709 = vmul.f32 %v535, %v677
        %v710 = vmul.f32 %v540, %v678
        %v711 = vmul.f32 %v543, %v679
        %v712 = vmul.f32 %v548, %v680
        %v713 = vmul.f32 %v551, %v681
        %714 = vst [vmem:[%s188] sm:$0xff] %v682
        %715 = vst [vmem:[%s188 + $0x8] sm:$0xff] %v683
        %716 = vst [vmem:[%s188 + $0x10] sm:$0xff] %v684
        %717 = vst [vmem:[%s188 + $0x18] sm:$0xff] %v685
        %718 = vst [vmem:[%s188 + $0x20] sm:$0xff] %v686
        %719 = vst [vmem:[%s188 + $0x28] sm:$0xff] %v687
        %720 = vst [vmem:[%s188 + $0x30] sm:$0xff] %v688
        %721 = vst [vmem:[%s188 + $0x38] sm:$0xff] %v689
        %722 = vst [vmem:[%s188 + $0x40] sm:$0xff] %v690
        %723 = vst [vmem:[%s188 + $0x48] sm:$0xff] %v691
        %724 = vst [vmem:[%s188 + $0x50] sm:$0xff] %v692
        %725 = vst [vmem:[%s188 + $0x58] sm:$0xff] %v693
        %726 = vst [vmem:[%s188 + $0x60] sm:$0xff] %v694
        %727 = vst [vmem:[%s188 + $0x68] sm:$0xff] %v695
        %728 = vst [vmem:[%s188 + $0x70] sm:$0xff] %v696
        %729 = vst [vmem:[%s188 + $0x78] sm:$0xff] %v697
        %730 = vst [vmem:[%s188 + $0x80] sm:$0xff] %v698
        %731 = vst [vmem:[%s188 + $0x88] sm:$0xff] %v699
        %732 = vst [vmem:[%s188 + $0x90] sm:$0xff] %v700
        %733 = vst [vmem:[%s188 + $0x98] sm:$0xff] %v701
        %734 = vst [vmem:[%s188 + $0xa0] sm:$0xff] %v702
        %735 = vst [vmem:[%s188 + $0xa8] sm:$0xff] %v703
        %736 = vst [vmem:[%s188 + $0xb0] sm:$0xff] %v704
        %737 = vst [vmem:[%s188 + $0xb8] sm:$0xff] %v705
        %738 = vst [vmem:[%s188 + $0xc0] sm:$0xff] %v706
        %739 = vst [vmem:[%s188 + $0xc8] sm:$0xff] %v707
        %740 = vst [vmem:[%s188 + $0xd0] sm:$0xff] %v708
        %741 = vst [vmem:[%s188 + $0xd8] sm:$0xff] %v709
        %742 = vst [vmem:[%s188 + $0xe0] sm:$0xff] %v710
        %743 = vst [vmem:[%s188 + $0xe8] sm:$0xff] %v711
        %744 = vst [vmem:[%s188 + $0xf0] sm:$0xff] %v712
        %745 = vst [vmem:[%s188 + $0xf8] sm:$0xff] %v713
        %s746 = sand.u32 %s109, 1
        %s747 = scalar_lea.sflag [#allocation3], %s746
        %s748 = sand.u32 %s109, 1
        %s749 = smul.addr %s748, 256
        %s750 = scalar_lea.vmem [#allocation2], %s749
        // Predicated region
        $region33: #{tpu_custom_call.1} parent=31 // pred_check
          %p751 = pneg %p119
        $region34: #{tpu_custom_call.1} parent=31 // pred_check_branch
          %753 = sbr.rel (%p751) target = $region36
        $region35: #{tpu_custom_call.1} parent=31 // pred_region
          %s754 = smul.u32 32, %s22
          %s756 = ssub.s32 4096, 4096
          %757 = vsyncadd %s747, %s756
          %s758 = smul.addr %s21, 32
          %s759 = sadd.s32 %s754, %s758
          %s760 = smul.addr %s759, 128
          %s761 = scalar_lea.hbm %s3, %s760
          %s762 = sshll.u32 %s750, 4
          %s763 = int_to_ptr.vmem [resolvable:$true] %s762
          %768 = dma.vmem_to_hbm [thread:$0]  %s763, 4096, %s761, %s747, 128, 128, 8
        $region36: #{tpu_custom_call.1} parent=31 // pred_fallthru
          _
      $region32: #{tpu_custom_call.1} parent=5 // pred_fallthru
        _
      %p769 = scmp.le.s32.totalorder 2, %s12
      // Predicated region
      $region37: #{tpu_custom_call.1} parent=5 // pred_check
        %p770 = pneg %p769
      $region38: #{tpu_custom_call.1} parent=5 // pred_check_branch
        %772 = sbr.rel (%p770) target = $region40
      $region39: #{tpu_custom_call.1} parent=5 // pred_region
        %s773 = ssub.s32 %s12, 2
        // Predicated region
        $region41: #{tpu_custom_call.1} parent=39 // pred_check
          %p774 = pneg %p125
        $region42: #{tpu_custom_call.1} parent=39 // pred_check_branch
          %776 = sbr.rel (%p774) target = $region44
        $region43: #{tpu_custom_call.1} parent=39 // pred_region
          %s777 = sand.u32 %s110, 1
          %s778 = scalar_lea.sflag [#allocation3], %s777
          %s779 = sand.u32 %s110, 1
          %s780 = smul.addr %s779, 256
          %s781 = scalar_lea.vmem [#allocation2], %s780
          %782 = dma.done %s778, 4096
        $region44: #{tpu_custom_call.1} parent=39 // pred_fallthru
          _
      $region40: #{tpu_custom_call.1} parent=5 // pred_fallthru
        _
    $region6: #{tpu_custom_call.1} parent=1 // loop_footer
      %s16 = sadd.s32 1, %s12
    $region7: #{tpu_custom_call.1} parent=1 // loop_footer_branch
      %11 = sbr.rel target = $region3
    $region8: #{tpu_custom_call.1} parent=1 // loop_exit
      _
    %783 = vsyncpa [#allocation3], 1
    %s784 = scalar_lea.sflag [#allocation3], 1
    %785 = vsyncpa %s784, 1

</llo_original>
